<compile_context>
chip_gen: v6e
topology: v6e:2x2x1
jax: 0.10.0
libtpu: 0.0.40
codegen_flags: <defaults>
</compile_context>

<pallas_src>
import functools

import jax
import jax.numpy as jnp
from jax.experimental import pallas as pl
from jax.experimental.pallas import tpu as pltpu


def _conv1d_kernel(xl_ref, xm_ref, xr_ref, w_ref, b_ref, o_ref, *,
                   kernel_size, dilation, padding, tile_t, halo_rows, seq_len):
    # xl_ref : (1, halo_rows, C_in)  x rows [t*tile_t - halo_rows, t*tile_t)        (left halo)
    # xm_ref : (1, tile_t,    C_in)  x rows [t*tile_t, (t+1)*tile_t)                (main tile)
    # xr_ref : (1, halo_rows, C_in)  x rows [(t+1)*tile_t, (t+1)*tile_t+halo_rows)  (right halo)
    # w_ref  : (K, C_in, C_out)      w_ref[k, ci, co] = conv_weight[co, ci, k]
    # b_ref  : (1, C_out)            f32 bias
    # o_ref  : (1, tile_t, C_out)
    t = pl.program_id(1)

    # Assemble the sublane-aligned window and zero every row that falls outside
    # the real sequence: the conv's left/right zero padding, the last tile's
    # boundary straddle and any clamped halo block all land here.
    xcat = jnp.concatenate([xl_ref[0], xm_ref[0], xr_ref[0]], axis=0)
    rows = tile_t + 2 * halo_rows
    row_idx = t * tile_t - halo_rows + jax.lax.broadcasted_iota(jnp.int32, (rows, 1), 0)
    valid = (row_idx >= 0) & (row_idx < seq_len)
    xcat = jnp.where(valid, xcat, jnp.zeros_like(xcat))

    c_out = o_ref.shape[-1]
    acc = jnp.zeros((tile_t, c_out), jnp.float32)
    for k in range(kernel_size):                       # K is static -> unrolled
        off = halo_rows - padding + k * dilation       # static sublane offset
        xk = xcat[off:off + tile_t, :]                 # (tile_t, C_in)
        acc = acc + jnp.dot(xk, w_ref[k], preferred_element_type=jnp.float32)
    acc = acc + b_ref[...]                             # (1, C_out) f32 broadcast
    o_ref[0] = acc.astype(o_ref.dtype)


def _round_up(n, m):
    return ((n + m - 1) // m) * m


def conv_forward(x, weight, bias=None, *, stride=1, padding=0, dilation=1, tile_t=None):
    """Equivalent of Conv.forward: x (B, T, C_in) -> (B, T_out, C_out).

    weight: (C_out, C_in, K) -- PyTorch Conv1d layout.  bias: (C_out,) or None.
    """
    if stride != 1:
        # TODO(synk): stride > 1 would need a strided time gather; FS2's Conv uses stride=1.
        raise NotImplementedError("stride != 1 not implemented")

    B, T, C_in = x.shape
    C_out, C_in_w, K = weight.shape
    assert C_in == C_in_w

    halo = dilation * (K - 1)
    # TODO(synk): 2*padding > halo (output longer than input) would need extra
    # boundary handling; FS2 only uses "same"/valid-style convs.
    assert 2 * padding <= halo

    T_out = T + 2 * padding - halo
    assert T_out > 0

    # Smallest power-of-two multiple of 8 sublanes that covers the halo / padding.
    halo_rows = 8
    while halo_rows < max(halo, padding):
        halo_rows *= 2
    assert halo_rows <= 128, "receptive-field halo too large for one halo block"

    if tile_t is None:
        cap = 2048                                     # ~1-2 MiB/step VMEM: fine on v5e/v6e/v7x
        if B == 1:
            # Keep at least 2 time tiles so both v7x TensorCores get work.
            cap = min(cap, max(128, _round_up(pl.cdiv(T_out, 2), 128)))
        tile_t = min(cap, _round_up(T_out, 8))
    tile_t = _round_up(tile_t, halo_rows)

    n_t = pl.cdiv(T_out, tile_t)
    tpb = tile_t // halo_rows                          # halo blocks per time tile
    n_halo_blocks = pl.cdiv(T, halo_rows)
    n_main_blocks = pl.cdiv(T, tile_t)

    out_dtype = x.dtype
    # Tiny host-side weight unfold (negligible): w_taps[k, ci, co] = weight[co, ci, k].
    w_taps = jnp.transpose(weight, (2, 1, 0))
    if bias is None:
        bias = jnp.zeros((C_out,), jnp.float32)
    b2 = bias.astype(jnp.float32).reshape(1, C_out)

    kernel = functools.partial(
        _conv1d_kernel, kernel_size=K, dilation=dilation, padding=padding,
        tile_t=tile_t, halo_rows=halo_rows, seq_len=T)

    flops = 2 * B * T_out * C_out * C_in * K
    bytes_accessed = (x.size * x.dtype.itemsize
                      + B * T_out * C_out * jnp.dtype(out_dtype).itemsize
                      + w_taps.size * w_taps.dtype.itemsize)

    # Halo / main block indices are clamped into range; any rows the clamping or
    # boundary straddle makes wrong are zeroed in-kernel by the seq-len mask.
    left_map = lambda b, t: (b, jnp.maximum(jnp.minimum(t * tpb - 1, n_halo_blocks - 1), 0), 0)
    main_map = lambda b, t: (b, jnp.minimum(t, n_main_blocks - 1), 0)
    right_map = lambda b, t: (b, jnp.minimum((t + 1) * tpb, n_halo_blocks - 1), 0)

    y = pl.pallas_call(
        kernel,
        out_shape=jax.ShapeDtypeStruct((B, T_out, C_out), out_dtype),
        grid=(B, n_t),
        in_specs=[
            pl.BlockSpec((1, halo_rows, C_in), left_map),
            pl.BlockSpec((1, tile_t, C_in), main_map),
            pl.BlockSpec((1, halo_rows, C_in), right_map),
            pl.BlockSpec((K, C_in, C_out), lambda b, t: (0, 0, 0)),   # resident weight
            pl.BlockSpec((1, C_out), lambda b, t: (0, 0)),            # resident bias
        ],
        out_specs=pl.BlockSpec((1, tile_t, C_out), lambda b, t: (b, t, 0)),
        compiler_params=pltpu.CompilerParams(
            dimension_semantics=("parallel", "parallel")),
        cost_estimate=pl.CostEstimate(
            flops=flops, transcendentals=0, bytes_accessed=bytes_accessed),
    )(x, x, x, w_taps, b2)
    return y


def _xavier_uniform(key, shape, fan_in, fan_out):
    bound = (6.0 / (fan_in + fan_out)) ** 0.5
    return jax.random.uniform(key, shape, jnp.float32, -bound, bound)


if __name__ == "__main__":
    # Module config (typical FS2 variance-predictor style conv).
    in_channels, out_channels = 32, 32
    kernel_size, stride, padding, dilation = 3, 1, 1, 1

    B, T = 2, 16

    key = jax.random.PRNGKey(0)
    kx, kw, kb = jax.random.split(key, 3)

    x = jax.random.normal(kx, (B, T, in_channels), jnp.float32)
    # PyTorch Conv1d weight: (C_out, C_in, K); xavier ("linear" gain = 1).
    fan_in = in_channels * kernel_size
    fan_out = out_channels * kernel_size
    weight = _xavier_uniform(kw, (out_channels, in_channels, kernel_size), fan_in, fan_out)
    bias = jax.random.uniform(kb, (out_channels,), jnp.float32, -0.1, 0.1)

    y = conv_forward(x, weight, bias, stride=stride, padding=padding, dilation=dilation)
    y = jax.block_until_ready(y)

    # Pure-JAX reference (same semantics as transpose -> Conv1d -> transpose).
    x_ncl = jnp.transpose(x, (0, 2, 1))
    y_ref = jax.lax.conv_general_dilated(
        x_ncl, weight,
        window_strides=(stride,), padding=[(padding, padding)],
        rhs_dilation=(dilation,),
        dimension_numbers=("NCH", "OIH", "NCH"),
    ) + bias[None, :, None]
    y_ref = jnp.transpose(y_ref, (0, 2, 1))

    assert y.shape == y_ref.shape, (y.shape, y_ref.shape)
    assert jnp.allclose(y, y_ref, atol=1e-4, rtol=1e-4), float(jnp.max(jnp.abs(y - y_ref)))

    print("KERNEL_OK")
</pallas_src>

<mosaic_0001>
module attributes {stable_mosaic.version = 11 : i64} {
  func.func @_conv1d_kernel(%arg0: i32, %arg1: i32, %arg2: memref<1x8x32xf32, #tpu.memory_space<vmem>>, %arg3: memref<1x16x32xf32, #tpu.memory_space<vmem>>, %arg4: memref<1x8x32xf32, #tpu.memory_space<vmem>>, %arg5: memref<3x32x32xf32, #tpu.memory_space<vmem>>, %arg6: memref<1x32xf32, #tpu.memory_space<vmem>>, %arg7: memref<1x16x32xf32, #tpu.memory_space<vmem>>) attributes {dimension_semantics = [#tpu.dimension_semantics<parallel>, #tpu.dimension_semantics<parallel>], iteration_bounds = array<i64: 2, 1>, scalar_prefetch = 0 : i64, scratch_operands = 0 : i64, tpu.core_type = #tpu.core_type<tc>, window_params = [{transform_indices = @transform_0, window_bounds = array<i64: 1, 8, 32>}, {transform_indices = @transform_1, window_bounds = array<i64: 1, 16, 32>}, {transform_indices = @transform_2, window_bounds = array<i64: 1, 8, 32>}, {pipeline_mode = #tpu.pipeline_mode<synchronous>, transform_indices = @transform_3, window_bounds = array<i64: 3, 32, 32>}, {pipeline_mode = #tpu.pipeline_mode<synchronous>, transform_indices = @transform_4, window_bounds = array<i64: 1, 32>}, {transform_indices = @transform_5, window_bounds = array<i64: 1, 16, 32>}]} {
    %c0 = arith.constant 0 : index
    %c0_0 = arith.constant 0 : index
    %c0_1 = arith.constant 0 : index
    %0 = vector.load %arg2[%c0, %c0_0, %c0_1] : memref<1x8x32xf32, #tpu.memory_space<vmem>>, vector<1x8x32xf32>
    %1 = vector.shape_cast %0 : vector<1x8x32xf32> to vector<8x32xf32>
    %c0_2 = arith.constant 0 : index
    %c0_3 = arith.constant 0 : index
    %c0_4 = arith.constant 0 : index
    %2 = vector.load %arg3[%c0_2, %c0_3, %c0_4] : memref<1x16x32xf32, #tpu.memory_space<vmem>>, vector<1x16x32xf32>
    %3 = vector.shape_cast %2 : vector<1x16x32xf32> to vector<16x32xf32>
    %c0_5 = arith.constant 0 : index
    %c0_6 = arith.constant 0 : index
    %c0_7 = arith.constant 0 : index
    %4 = vector.load %arg4[%c0_5, %c0_6, %c0_7] : memref<1x8x32xf32, #tpu.memory_space<vmem>>, vector<1x8x32xf32>
    %5 = vector.shape_cast %4 : vector<1x8x32xf32> to vector<8x32xf32>
    %6 = tpu.concatenate %1, %3, %5 in 0 : vector<8x32xf32>, vector<16x32xf32>, vector<8x32xf32> -> vector<32x32xf32>
    %c16_i32 = arith.constant 16 : i32
    %7 = arith.muli %arg1, %c16_i32 : i32
    %c8_i32 = arith.constant 8 : i32
    %8 = arith.subi %7, %c8_i32 : i32
    %9 = tpu.iota {dimensions = array<i32: 0>} : vector<32x1xi32>
    %10 = vector.broadcast %8 : i32 to vector<32x1xi32>
    %11 = arith.addi %10, %9 : vector<32x1xi32>
    %c0_i32 = arith.constant 0 : i32
    %12 = vector.broadcast %c0_i32 : i32 to vector<32x1xi32>
    %13 = arith.cmpi sge, %11, %12 : vector<32x1xi32>
    %c16_i32_8 = arith.constant 16 : i32
    %14 = vector.broadcast %c16_i32_8 : i32 to vector<32x1xi32>
    %15 = arith.cmpi slt, %11, %14 : vector<32x1xi32>
    %16 = arith.andi %13, %15 : vector<32x1xi1>
    %cst = arith.constant 0.000000e+00 : f32
    %17 = vector.broadcast %cst : f32 to vector<32x32xf32>
    %18 = vector.shape_cast %16 : vector<32x1xi1> to vector<32x1xi1>
    %19 = vector.broadcast %18 : vector<32x1xi1> to vector<32x32xi1>
    %20 = arith.select %19, %6, %17 : vector<32x32xi1>, vector<32x32xf32>
    %cst_9 = arith.constant 0.000000e+00 : f32
    %21 = vector.broadcast %cst_9 : f32 to vector<16x32xf32>
    %22 = vector.extract_strided_slice %20 {offsets = [7, 0], sizes = [16, 32], strides = [1, 1]} : vector<32x32xf32> to vector<16x32xf32>
    %c0_10 = arith.constant 0 : index
    %c0_11 = arith.constant 0 : index
    %c0_12 = arith.constant 0 : index
    %23 = vector.load %arg5[%c0_10, %c0_11, %c0_12] : memref<3x32x32xf32, #tpu.memory_space<vmem>>, vector<1x32x32xf32>
    %24 = vector.shape_cast %23 : vector<1x32x32xf32> to vector<32x32xf32>
    %cst_13 = arith.constant dense<0.000000e+00> : vector<16x32xf32>
    %25 = tpu.matmul %22, %24, %cst_13 {dimension_numbers = #tpu.dot_dimension_numbers<[1], [0], [0], [1], [0, 0, 1, 1], [], []>} : vector<16x32xf32>, vector<32x32xf32>, vector<16x32xf32> -> vector<16x32xf32>
    %26 = arith.addf %21, %25 : vector<16x32xf32>
    %27 = vector.extract_strided_slice %20 {offsets = [8, 0], sizes = [16, 32], strides = [1, 1]} : vector<32x32xf32> to vector<16x32xf32>
    %c1 = arith.constant 1 : index
    %c0_14 = arith.constant 0 : index
    %c0_15 = arith.constant 0 : index
    %28 = vector.load %arg5[%c1, %c0_14, %c0_15] : memref<3x32x32xf32, #tpu.memory_space<vmem>>, vector<1x32x32xf32>
    %29 = vector.shape_cast %28 : vector<1x32x32xf32> to vector<32x32xf32>
    %cst_16 = arith.constant dense<0.000000e+00> : vector<16x32xf32>
    %30 = tpu.matmul %27, %29, %cst_16 {dimension_numbers = #tpu.dot_dimension_numbers<[1], [0], [0], [1], [0, 0, 1, 1], [], []>} : vector<16x32xf32>, vector<32x32xf32>, vector<16x32xf32> -> vector<16x32xf32>
    %31 = arith.addf %26, %30 : vector<16x32xf32>
    %32 = vector.extract_strided_slice %20 {offsets = [9, 0], sizes = [16, 32], strides = [1, 1]} : vector<32x32xf32> to vector<16x32xf32>
    %c2 = arith.constant 2 : index
    %c0_17 = arith.constant 0 : index
    %c0_18 = arith.constant 0 : index
    %33 = vector.load %arg5[%c2, %c0_17, %c0_18] : memref<3x32x32xf32, #tpu.memory_space<vmem>>, vector<1x32x32xf32>
    %34 = vector.shape_cast %33 : vector<1x32x32xf32> to vector<32x32xf32>
    %cst_19 = arith.constant dense<0.000000e+00> : vector<16x32xf32>
    %35 = tpu.matmul %32, %34, %cst_19 {dimension_numbers = #tpu.dot_dimension_numbers<[1], [0], [0], [1], [0, 0, 1, 1], [], []>} : vector<16x32xf32>, vector<32x32xf32>, vector<16x32xf32> -> vector<16x32xf32>
    %36 = arith.addf %31, %35 : vector<16x32xf32>
    %c0_20 = arith.constant 0 : index
    %c0_21 = arith.constant 0 : index
    %37 = vector.load %arg6[%c0_20, %c0_21] : memref<1x32xf32, #tpu.memory_space<vmem>>, vector<1x32xf32>
    %38 = vector.broadcast %37 : vector<1x32xf32> to vector<16x32xf32>
    %39 = arith.addf %36, %38 : vector<16x32xf32>
    %c0_22 = arith.constant 0 : index
    %c0_23 = arith.constant 0 : index
    %c0_24 = arith.constant 0 : index
    %40 = vector.load %arg7[%c0_22, %c0_23, %c0_24] : memref<1x16x32xf32, #tpu.memory_space<vmem>>, vector<1x16x32xf32>
    %41 = vector.shape_cast %40 : vector<1x16x32xf32> to vector<16x32xf32>
    %42 = vector.shape_cast %39 : vector<16x32xf32> to vector<1x16x32xf32>
    tpu.vector_store %arg7[%c0_22, %c0_23, %c0_24], %42 {strides = array<i32>} : memref<1x16x32xf32, #tpu.memory_space<vmem>>, vector<1x16x32xf32>,
    return
  }
  func.func @transform_0(%arg0: i32, %arg1: i32) -> (i32, i32, i32) {
    %c2_i32 = arith.constant 2 : i32
    %0 = arith.muli %arg1, %c2_i32 : i32
    %c1_i32 = arith.constant 1 : i32
    %1 = arith.subi %0, %c1_i32 : i32
    %c1_i32_0 = arith.constant 1 : i32
    %2 = arith.minsi %1, %c1_i32_0 : i32
    %c0_i32 = arith.constant 0 : i32
    %3 = arith.maxsi %2, %c0_i32 : i32
    %c0_i32_1 = arith.constant 0 : i32
    %c0_i32_2 = arith.constant 0 : i32
    return %arg0, %3, %c0_i32_1 : i32, i32, i32
  }
  func.func @transform_1(%arg0: i32, %arg1: i32) -> (i32, i32, i32) {
    %c0_i32 = arith.constant 0 : i32
    %0 = arith.minsi %arg1, %c0_i32 : i32
    %c0_i32_0 = arith.constant 0 : i32
    %c0_i32_1 = arith.constant 0 : i32
    return %arg0, %0, %c0_i32_0 : i32, i32, i32
  }
  func.func @transform_2(%arg0: i32, %arg1: i32) -> (i32, i32, i32) {
    %c1_i32 = arith.constant 1 : i32
    %0 = arith.addi %arg1, %c1_i32 : i32
    %c2_i32 = arith.constant 2 : i32
    %1 = arith.muli %0, %c2_i32 : i32
    %c1_i32_0 = arith.constant 1 : i32
    %2 = arith.minsi %1, %c1_i32_0 : i32
    %c0_i32 = arith.constant 0 : i32
    %c0_i32_1 = arith.constant 0 : i32
    return %arg0, %2, %c0_i32 : i32, i32, i32
  }
  func.func @transform_3(%arg0: i32, %arg1: i32) -> (i32, i32, i32) {
    %c0_i32 = arith.constant 0 : i32
    %c0_i32_0 = arith.constant 0 : i32
    %c0_i32_1 = arith.constant 0 : i32
    %c0_i32_2 = arith.constant 0 : i32
    return %c0_i32, %c0_i32_0, %c0_i32_1 : i32, i32, i32
  }
  func.func @transform_4(%arg0: i32, %arg1: i32) -> (i32, i32) {
    %c0_i32 = arith.constant 0 : i32
    %c0_i32_0 = arith.constant 0 : i32
    %c0_i32_1 = arith.constant 0 : i32
    return %c0_i32, %c0_i32_0 : i32, i32
  }
  func.func @transform_5(%arg0: i32, %arg1: i32) -> (i32, i32, i32) {
    %c0_i32 = arith.constant 0 : i32
    %c0_i32_0 = arith.constant 0 : i32
    return %arg0, %arg1, %c0_i32 : i32, i32, i32
  }
}

</mosaic_0001>

<llo_original>
// kernel: tpu_custom_call.1
$region0: #{tpu_custom_call.1}
  #allocation0 [shape = 'u32[]', space=smem, size = 0x4, offset = 0x4, fixed_abs, tag = 'smem constant byte address 0x4 - core index']
  #allocation1 [shape = 'u32[144,128]{1,0:T(1,128)}', space=vmem, size = 0x12000, scoped, tag = 'internal scratch']
  %s0 = inlined_call_operand.hbm [shape: f32[2,16,32], index: 0, kind: input, shape index: {}]
  %s1 = inlined_call_operand.hbm [shape: f32[2,16,32], index: 1, kind: input, shape index: {}]
  %s2 = inlined_call_operand.hbm [shape: f32[2,16,32], index: 2, kind: input, shape index: {}]
  %s3 = inlined_call_operand.hbm [shape: f32[3,32,32], index: 3, kind: input, shape index: {}]
  %s4 = inlined_call_operand.vmem [shape: f32[1,32], index: 4, kind: input, shape index: {}]
  %s5 = inlined_call_operand.hbm [shape: f32[2,16,32], index: 5, kind: output, shape index: {}]
  %s6 = sld [smem:[#allocation0]]
  $region69: #{tpu_custom_call.1} parent=0
    _
  %s8 = ssub.s32 1, %s6
  %s9 = scalar_select 0, %s8, %s6
  $region1: #{tpu_custom_call.1} parent=0
    #allocation2 [shape = 'u8[8192]{0}', space=vmem, size = 0x2000, scoped, tag = 'input window, operand 0']
    #allocation3 [shape = 's32[2]{0}', space=sflag, size = 0x8, scoped, tag = 'scoped memory for tpu_custom_call.1']
    #allocation4 [shape = 's32[2]{0}', space=sflag, size = 0x8, scoped, tag = 'scoped memory for tpu_custom_call.1']
    #allocation5 [shape = 'u8[16384]{0}', space=vmem, size = 0x4000, scoped, tag = 'input window, operand 1']
    #allocation6 [shape = 's32[2]{0}', space=sflag, size = 0x8, scoped, tag = 'scoped memory for tpu_custom_call.1']
    #allocation7 [shape = 'u8[8192]{0}', space=vmem, size = 0x2000, scoped, tag = 'input window, operand 2']
    #allocation8 [shape = 'u8[49152]{0}', space=vmem, size = 0xc000, scoped, tag = 'input window, operand 3, single buffered']
    #allocation9 [shape = 's32[1]{0}', space=sflag, size = 0x4, scoped, tag = 'scoped memory for tpu_custom_call.1']
    #allocation10 [shape = 'u8[16384]{0}', space=vmem, size = 0x4000, scoped, tag = 'output window, operand 0']
    %10 = vsyncpa [#allocation3], 0
    %s11 = scalar_lea.sflag [#allocation3], 1
    %12 = vsyncpa %s11, 0
    %13 = vsyncpa [#allocation6], 0
    %s14 = scalar_lea.sflag [#allocation6], 1
    %15 = vsyncpa %s14, 0
    %16 = vsyncpa [#allocation9], 0
    %17 = vsyncpa [#allocation4], 0
    %s18 = scalar_lea.sflag [#allocation4], 1
    %19 = vsyncpa %s18, 0
    loop: start=0, step=1, limit=4
    $region2: #{tpu_custom_call.1} parent=1 // loop_pre_header
      _
    $region3: #{tpu_custom_call.1} parent=1 // loop_header
      %s21 = sphi 0, %s25
      %p22 = scmp.ge.s32.totalorder %s21, 4
      %s28 = sphi 0, %s40
      %s29 = sphi 0, %s36
      %s30 = sphi 0, %s28
      %s31 = sphi 0, %s29
      %s32 = sphi 0, %s30
      %s33 = sphi 0, %s31
      %s57 = sphi 0, %s59
      %s60 = sphi 0, %s57
      %s61 = sphi 0, %s60
      %s77 = sphi 0, %s61
      %s89 = sphi 0, %s91
      %s92 = sphi 0, %s89
      %s93 = sphi 0, %s92
      %s109 = sphi 0, %s93
      %s125 = sphi 0, %s127
      %s128 = sphi 0, %s125
      %s129 = sphi 0, %s128
      %s145 = sphi 0, %s129
      %s149 = sphi 0, %s149
      %s151 = sphi 0, %s149
      %s152 = sphi 0, %s151
      %s166 = sphi 0, %s152
      %s170 = sphi 0, %s170
      %s172 = sphi 0, %s170
      %s173 = sphi 0, %s172
      %s187 = sphi 0, %s173
      %s195 = sphi 0, %s197
      %s198 = sphi 0, %s195
      %s199 = sphi 0, %s198
      %s215 = sphi 0, %s199
    $region4: #{tpu_custom_call.1} parent=1 // loop_header_branch
      %24 = sbr.rel (%p22) target = $region8
    $region5: #{tpu_custom_call.1} parent=1 // loop_body
      %s26 = ssub.s32 %s21, 1
      %s27 = ssub.s32 %s21, 2
      %s34 = sadd.s32 1, %s29
      %p35 = scmp.ge.s32.totalorder %s34, 1
      %s36 = scalar_select %p35, 0, %s34
      %s37 = sadd.s32 1, %s28
      %s38 = scalar_select %p35, %s37, %s28
      %p39 = scmp.ge.s32.totalorder %s38, 2
      %s40 = scalar_select %p39, 0, %s38
      %s41 = smul.u32 %s29, 2
      %s42 = ssub.s32 %s41, 1
      %p43 = scmp.lt.s32.totalorder %s42, 1
      %s44 = scalar_select %p43, %s42, 1
      %p45 = scmp.gt.s32.totalorder %s44, 0
      %s46 = scalar_select %p45, %s44, 0
      %s47 = smul.u32 %s36, 2
      %s48 = ssub.s32 %s47, 1
      %p49 = scmp.lt.s32.totalorder %s48, 1
      %s50 = scalar_select %p49, %s48, 1
      %p51 = scmp.gt.s32.totalorder %s50, 0
      %s52 = scalar_select %p51, %s50, 0
      %s53 = ssub.s32 %s28, %s40
      %s54 = ssub.s32 %s46, %s52
      %s55 = sor.u32 %s53, %s54
      %p56 = scmp.eq.s32.totalorder %s55, 0
      %s58 = sadd.s32 %s57, 1
      %s59 = scalar_select %p56, %s57, %s58
      %p62 = pneg %p56
      %p63 = scmp.eq.s32.totalorder %s21, 1
      %p64 = por %p62, %p63
      %p65 = scmp.ne.s32.totalorder %s57, %s60
      %p66 = scmp.eq.s32.totalorder %s21, 0
      %p67 = por %p65, %p66
      %p68 = scmp.ne.s32.totalorder %s57, %s60
      %p69 = scmp.eq.s32.totalorder %s26, 1
      %p70 = por %p68, %p69
      %p71 = scmp.ne.s32.totalorder %s60, %s61
      %p72 = scmp.eq.s32.totalorder %s26, 0
      %p73 = por %p71, %p72
      %p74 = scmp.ne.s32.totalorder %s60, %s61
      %p75 = scmp.eq.s32.totalorder %s27, 1
      %p76 = por %p74, %p75
      %p78 = scmp.ne.s32.totalorder %s61, %s77
      %p79 = scmp.eq.s32.totalorder %s27, 0
      %p80 = por %p78, %p79
      %p81 = scmp.lt.s32.totalorder %s29, 0
      %s82 = scalar_select %p81, %s29, 0
      %p83 = scmp.lt.s32.totalorder %s36, 0
      %s84 = scalar_select %p83, %s36, 0
      %s85 = ssub.s32 %s28, %s40
      %s86 = ssub.s32 %s82, %s84
      %s87 = sor.u32 %s85, %s86
      %p88 = scmp.eq.s32.totalorder %s87, 0
      %s90 = sadd.s32 %s89, 1
      %s91 = scalar_select %p88, %s89, %s90
      %p94 = pneg %p88
      %p95 = scmp.eq.s32.totalorder %s21, 1
      %p96 = por %p94, %p95
      %p97 = scmp.ne.s32.totalorder %s89, %s92
      %p98 = scmp.eq.s32.totalorder %s21, 0
      %p99 = por %p97, %p98
      %p100 = scmp.ne.s32.totalorder %s89, %s92
      %p101 = scmp.eq.s32.totalorder %s26, 1
      %p102 = por %p100, %p101
      %p103 = scmp.ne.s32.totalorder %s92, %s93
      %p104 = scmp.eq.s32.totalorder %s26, 0
      %p105 = por %p103, %p104
      %p106 = scmp.ne.s32.totalorder %s92, %s93
      %p107 = scmp.eq.s32.totalorder %s27, 1
      %p108 = por %p106, %p107
      %p110 = scmp.ne.s32.totalorder %s93, %s109
      %p111 = scmp.eq.s32.totalorder %s27, 0
      %p112 = por %p110, %p111
      %s113 = sadd.s32 %s29, 1
      %s114 = smul.u32 %s113, 2
      %p115 = scmp.lt.s32.totalorder %s114, 1
      %s116 = scalar_select %p115, %s114, 1
      %s117 = sadd.s32 %s36, 1
      %s118 = smul.u32 %s117, 2
      %p119 = scmp.lt.s32.totalorder %s118, 1
      %s120 = scalar_select %p119, %s118, 1
      %s121 = ssub.s32 %s28, %s40
      %s122 = ssub.s32 %s116, %s120
      %s123 = sor.u32 %s121, %s122
      %p124 = scmp.eq.s32.totalorder %s123, 0
      %s126 = sadd.s32 %s125, 1
      %s127 = scalar_select %p124, %s125, %s126
      %p130 = pneg %p124
      %p131 = scmp.eq.s32.totalorder %s21, 1
      %p132 = por %p130, %p131
      %p133 = scmp.ne.s32.totalorder %s125, %s128
      %p134 = scmp.eq.s32.totalorder %s21, 0
      %p135 = por %p133, %p134
      %p136 = scmp.ne.s32.totalorder %s125, %s128
      %p137 = scmp.eq.s32.totalorder %s26, 1
      %p138 = por %p136, %p137
      %p139 = scmp.ne.s32.totalorder %s128, %s129
      %p140 = scmp.eq.s32.totalorder %s26, 0
      %p141 = por %p139, %p140
      %p142 = scmp.ne.s32.totalorder %s128, %s129
      %p143 = scmp.eq.s32.totalorder %s27, 1
      %p144 = por %p142, %p143
      %p146 = scmp.ne.s32.totalorder %s129, %s145
      %p147 = scmp.eq.s32.totalorder %s27, 0
      %p148 = por %p146, %p147
      %s150 = sadd.s32 %s149, 1
      %p153 = scmp.eq.s32.totalorder %s21, 1
      %p154 = scmp.ne.s32.totalorder %s149, %s151
      %p155 = scmp.eq.s32.totalorder %s21, 0
      %p156 = por %p154, %p155
      %p157 = scmp.ne.s32.totalorder %s149, %s151
      %p158 = scmp.eq.s32.totalorder %s26, 1
      %p159 = por %p157, %p158
      %p160 = scmp.ne.s32.totalorder %s151, %s152
      %p161 = scmp.eq.s32.totalorder %s26, 0
      %p162 = por %p160, %p161
      %p163 = scmp.ne.s32.totalorder %s151, %s152
      %p164 = scmp.eq.s32.totalorder %s27, 1
      %p165 = por %p163, %p164
      %p167 = scmp.ne.s32.totalorder %s152, %s166
      %p168 = scmp.eq.s32.totalorder %s27, 0
      %p169 = por %p167, %p168
      %s171 = sadd.s32 %s170, 1
      %p174 = scmp.eq.s32.totalorder %s21, 1
      %p175 = scmp.ne.s32.totalorder %s170, %s172
      %p176 = scmp.eq.s32.totalorder %s21, 0
      %p177 = por %p175, %p176
      %p178 = scmp.ne.s32.totalorder %s170, %s172
      %p179 = scmp.eq.s32.totalorder %s26, 1
      %p180 = por %p178, %p179
      %p181 = scmp.ne.s32.totalorder %s172, %s173
      %p182 = scmp.eq.s32.totalorder %s26, 0
      %p183 = por %p181, %p182
      %p184 = scmp.ne.s32.totalorder %s172, %s173
      %p185 = scmp.eq.s32.totalorder %s27, 1
      %p186 = por %p184, %p185
      %p188 = scmp.ne.s32.totalorder %s173, %s187
      %p189 = scmp.eq.s32.totalorder %s27, 0
      %p190 = por %p188, %p189
      %s191 = ssub.s32 %s28, %s40
      %s192 = ssub.s32 %s29, %s36
      %s193 = sor.u32 %s191, %s192
      %p194 = scmp.eq.s32.totalorder %s193, 0
      %s196 = sadd.s32 %s195, 1
      %s197 = scalar_select %p194, %s195, %s196
      %p200 = pneg %p194
      %p201 = scmp.eq.s32.totalorder %s21, 1
      %p202 = por %p200, %p201
      %p203 = scmp.ne.s32.totalorder %s195, %s198
      %p204 = scmp.eq.s32.totalorder %s21, 0
      %p205 = por %p203, %p204
      %p206 = scmp.ne.s32.totalorder %s195, %s198
      %p207 = scmp.eq.s32.totalorder %s26, 1
      %p208 = por %p206, %p207
      %p209 = scmp.ne.s32.totalorder %s198, %s199
      %p210 = scmp.eq.s32.totalorder %s26, 0
      %p211 = por %p209, %p210
      %p212 = scmp.ne.s32.totalorder %s198, %s199
      %p213 = scmp.eq.s32.totalorder %s27, 1
      %p214 = por %p212, %p213
      %p216 = scmp.ne.s32.totalorder %s199, %s215
      %p217 = scmp.eq.s32.totalorder %s27, 0
      %p218 = por %p216, %p217
      %p219 = scmp.le.s32.totalorder 1, %s21
      %p220 = scmp.lt.s32.totalorder %s21, 3
      %p221 = pnand %p219, %p220
      %p222 = pneg %p221
      // Predicated region
      $region9: #{tpu_custom_call.1} parent=5 // pred_check
        _
      $region10: #{tpu_custom_call.1} parent=5 // pred_check_branch
        %224 = sbr.rel (%p221) target = $region12
      $region11: #{tpu_custom_call.1} parent=5 // pred_region
        %s225 = ssub.s32 %s21, 1
        // Predicated region
        $region13: #{tpu_custom_call.1} parent=11 // pred_check
          %p226 = pneg %p162
        $region14: #{tpu_custom_call.1} parent=11 // pred_check_branch
          %228 = sbr.rel (%p226) target = $region16
        $region15: #{tpu_custom_call.1} parent=11 // pred_region
          %s230 = ssub.s32 1536, 1536
          %231 = vsyncadd [#allocation9], %s230
          %s232 = sshll.u32 [#allocation8], 4
          %s233 = int_to_ptr.vmem [resolvable:$true] %s232
          %238 = dma.hbm_to_vmem [thread:$0]  %s3, 1536, %s233, [#allocation9], 128, 128, 8
        $region16: #{tpu_custom_call.1} parent=11 // pred_fallthru
          _
        // Predicated region
        $region17: #{tpu_custom_call.1} parent=11 // pred_check
          %p239 = pneg %p183
        $region18: #{tpu_custom_call.1} parent=11 // pred_check_branch
          %241 = sbr.rel (%p239) target = $region20
        $region19: #{tpu_custom_call.1} parent=11 // pred_region
          _
        $region20: #{tpu_custom_call.1} parent=11 // pred_fallthru
          _
      $region12: #{tpu_custom_call.1} parent=5 // pred_fallthru
        _
      %p242 = scmp.lt.s32.totalorder %s21, 2
      // Predicated region
      $region21: #{tpu_custom_call.1} parent=5 // pred_check
        %p243 = pneg %p242
      $region22: #{tpu_custom_call.1} parent=5 // pred_check_branch
        %245 = sbr.rel (%p243) target = $region24
      $region23: #{tpu_custom_call.1} parent=5 // pred_region
        // Predicated region
        $region25: #{tpu_custom_call.1} parent=23 // pred_check
          %p246 = pneg %p67
        $region26: #{tpu_custom_call.1} parent=23 // pred_check_branch
          %248 = sbr.rel (%p246) target = $region28
        $region27: #{tpu_custom_call.1} parent=23 // pred_region
          %s249 = sand.u32 %s57, 1
          %s250 = scalar_lea.sflag [#allocation3], %s249
          %s251 = sand.u32 %s57, 1
          %s252 = smul.addr %s251, 8
          %s253 = scalar_lea.vmem [#allocation2], %s252
          %s254 = smul.u32 %s29, 2
          %s255 = ssub.s32 %s254, 1
          %p256 = scmp.lt.s32.totalorder %s255, 1
          %s257 = scalar_select %p256, %s255, 1
          %p258 = scmp.gt.s32.totalorder %s257, 0
          %s259 = scalar_select %p258, %s257, 0
          %s261 = ssub.s32 128, 128
          %262 = vsyncadd %s250, %s261
          %s263 = smul.addr %s28, 2
          %s264 = sadd.s32 %s259, %s263
          %s265 = smul.addr %s264, 128
          %s266 = scalar_lea.hbm %s0, %s265
          %s268 = sshll.u32 %s253, 4
          %s269 = int_to_ptr.vmem [resolvable:$true] %s268
          %271 = dma.hbm_to_vmem [thread:$0]  %s266, 128, %s269, %s250
        $region28: #{tpu_custom_call.1} parent=23 // pred_fallthru
          _
        // Predicated region
        $region29: #{tpu_custom_call.1} parent=23 // pred_check
          %p272 = pneg %p99
        $region30: #{tpu_custom_call.1} parent=23 // pred_check_branch
          %274 = sbr.rel (%p272) target = $region32
        $region31: #{tpu_custom_call.1} parent=23 // pred_region
          %s275 = sand.u32 %s21, 1
          %s276 = scalar_lea.sflag [#allocation6], %s275
          %s277 = sand.u32 %s89, 1
          %s278 = smul.addr %s277, 16
          %s279 = scalar_lea.vmem [#allocation5], %s278
          %p280 = scmp.lt.s32.totalorder %s29, 0
          %s281 = scalar_select %p280, %s29, 0
          %s282 = smul.u32 2, %s281
          %s284 = ssub.s32 256, 256
          %285 = vsyncadd %s276, %s284
          %s286 = smul.addr %s28, 2
          %s287 = sadd.s32 %s282, %s286
          %s288 = smul.addr %s287, 128
          %s289 = scalar_lea.hbm %s1, %s288
          %s290 = sshll.u32 %s279, 4
          %s291 = int_to_ptr.vmem [resolvable:$true] %s290
          %296 = dma.hbm_to_vmem [thread:$0]  %s289, 256, %s291, %s276, 128, 128, 8
        $region32: #{tpu_custom_call.1} parent=23 // pred_fallthru
          _
        // Predicated region
        $region33: #{tpu_custom_call.1} parent=23 // pred_check
          %p297 = pneg %p135
        $region34: #{tpu_custom_call.1} parent=23 // pred_check_branch
          %299 = sbr.rel (%p297) target = $region36
        $region35: #{tpu_custom_call.1} parent=23 // pred_region
          %s300 = sand.u32 %s21, 1
          %s301 = scalar_lea.sflag [#allocation6], %s300
          %s302 = sand.u32 %s125, 1
          %s303 = smul.addr %s302, 8
          %s304 = scalar_lea.vmem [#allocation7], %s303
          %s305 = sadd.s32 %s29, 1
          %s306 = smul.u32 %s305, 2
          %p307 = scmp.lt.s32.totalorder %s306, 1
          %s308 = scalar_select %p307, %s306, 1
          %s310 = ssub.s32 128, 128
          %311 = vsyncadd %s301, %s310
          %s312 = smul.addr %s28, 2
          %s313 = sadd.s32 %s308, %s312
          %s314 = smul.addr %s313, 128
          %s315 = scalar_lea.hbm %s2, %s314
          %s317 = sshll.u32 %s304, 4
          %s318 = int_to_ptr.vmem [resolvable:$true] %s317
          %320 = dma.hbm_to_vmem [thread:$0]  %s315, 128, %s318, %s301
        $region36: #{tpu_custom_call.1} parent=23 // pred_fallthru
          _
      $region24: #{tpu_custom_call.1} parent=5 // pred_fallthru
        _
      %p321 = scmp.le.s32.totalorder 1, %s21
      %p322 = scmp.lt.s32.totalorder %s21, 3
      %p323 = pnand %p321, %p322
      %p324 = pneg %p323
      // Predicated region
      $region37: #{tpu_custom_call.1} parent=5 // pred_check
        _
      $region38: #{tpu_custom_call.1} parent=5 // pred_check_branch
        %326 = sbr.rel (%p323) target = $region40
      $region39: #{tpu_custom_call.1} parent=5 // pred_region
        %s327 = ssub.s32 %s21, 1
        %s328 = sand.u32 %s60, 1
        %s329 = scalar_lea.sflag [#allocation3], %s328
        %s330 = sand.u32 %s60, 1
        %s331 = smul.addr %s330, 8
        %s332 = scalar_lea.vmem [#allocation2], %s331
        // Predicated region
        $region41: #{tpu_custom_call.1} parent=39 // pred_check
          %p333 = pneg %p73
        $region42: #{tpu_custom_call.1} parent=39 // pred_check_branch
          %335 = sbr.rel (%p333) target = $region44
        $region43: #{tpu_custom_call.1} parent=39 // pred_region
          %336 = dma.done %s329, 128
        $region44: #{tpu_custom_call.1} parent=39 // pred_fallthru
          _
        %s337 = sand.u32 %s26, 1
        %s338 = scalar_lea.sflag [#allocation6], %s337
        %s339 = sand.u32 %s92, 1
        %s340 = smul.addr %s339, 16
        %s341 = scalar_lea.vmem [#allocation5], %s340
        // Predicated region
        $region45: #{tpu_custom_call.1} parent=39 // pred_check
          %p342 = pneg %p105
        $region46: #{tpu_custom_call.1} parent=39 // pred_check_branch
          %344 = sbr.rel (%p342) target = $region48
        $region47: #{tpu_custom_call.1} parent=39 // pred_region
          %345 = dma.done %s338, 256
        $region48: #{tpu_custom_call.1} parent=39 // pred_fallthru
          _
        %s346 = sand.u32 %s26, 1
        %s347 = scalar_lea.sflag [#allocation6], %s346
        %s348 = sand.u32 %s128, 1
        %s349 = smul.addr %s348, 8
        %s350 = scalar_lea.vmem [#allocation7], %s349
        // Predicated region
        $region49: #{tpu_custom_call.1} parent=39 // pred_check
          %p351 = pneg %p141
        $region50: #{tpu_custom_call.1} parent=39 // pred_check_branch
          %353 = sbr.rel (%p351) target = $region52
        $region51: #{tpu_custom_call.1} parent=39 // pred_region
          %354 = dma.done %s347, 128
        $region52: #{tpu_custom_call.1} parent=39 // pred_fallthru
          _
        // Predicated region
        $region53: #{tpu_custom_call.1} parent=39 // pred_check
          %p355 = pneg %p162
        $region54: #{tpu_custom_call.1} parent=39 // pred_check_branch
          %357 = sbr.rel (%p355) target = $region56
        $region55: #{tpu_custom_call.1} parent=39 // pred_region
          %358 = dma.done [#allocation9], 1536
        $region56: #{tpu_custom_call.1} parent=39 // pred_fallthru
          _
        %s359 = sand.u32 %s60, 1
        %s360 = scalar_lea.sflag [#allocation3], %s359
        %s361 = sand.u32 %s60, 1
        %s362 = smul.addr %s361, 8
        %s363 = scalar_lea.vmem [#allocation2], %s362
        %p364 = pneg %p73
        %p365 = pneg %p70
        %s366 = sand.u32 %s26, 1
        %s367 = scalar_lea.sflag [#allocation6], %s366
        %s368 = sand.u32 %s92, 1
        %s369 = smul.addr %s368, 16
        %s370 = scalar_lea.vmem [#allocation5], %s369
        %p371 = pneg %p105
        %p372 = pneg %p102
        %s373 = sand.u32 %s26, 1
        %s374 = scalar_lea.sflag [#allocation6], %s373
        %s375 = sand.u32 %s128, 1
        %s376 = smul.addr %s375, 8
        %s377 = scalar_lea.vmem [#allocation7], %s376
        %p378 = pneg %p141
        %p379 = pneg %p138
        %p380 = pneg %p162
        %p381 = pneg %p159
        %p382 = pneg %p183
        %p383 = pneg %p180
        %p384 = pneg %p211
        %p385 = pneg %p208
        %s386 = sand.u32 %s198, 1
        %s387 = scalar_lea.sflag [#allocation4], %s386
        %s388 = sand.u32 %s198, 1
        %s389 = smul.addr %s388, 16
        %s390 = scalar_lea.vmem [#allocation10], %s389
        %s391 = smul.u32 %s31, 2
        %s392 = ssub.s32 %s391, 1
        %p393 = scmp.lt.s32.totalorder %s392, 1
        %s394 = scalar_select %p393, %s392, 1
        %p395 = scmp.gt.s32.totalorder %s394, 0
        %s396 = scalar_select %p395, %s394, 0
        %p397 = scmp.lt.s32.totalorder %s31, 0
        %s398 = scalar_select %p397, %s31, 0
        %s399 = smul.u32 2, %s398
        %s400 = sadd.s32 %s31, 1
        %s401 = smul.u32 %s400, 2
        %p402 = scmp.lt.s32.totalorder %s401, 1
        %s403 = scalar_select %p402, %s401, 1
        %s404 = smul.u32 2, %s31
        %v405 = vld [vmem:[%s332] sm:$0xff]
        %v406 = vld [vmem:[%s341] sm:$0xff]
        %v407 = vld [vmem:[%s341 + $0x8] sm:$0xff]
        %v408 = vld [vmem:[%s350] sm:$0xff]
        %s409 = smul.u32 %s31, 16
        %s410 = ssub.s32 %s409, 8
        %v411 = vlaneseq
        %v412 = vshrl.u32 %v411, 7
        %v413 = vadd.s32 %v412, 8
        %v414 = vadd.s32 %v412, 16
        %v415 = vadd.s32 %v412, 24
        %v416 = vstv %s410
        %v417 = vadd.s32 %v416, %v412
        %v418 = vadd.s32 %v416, %v413
        %v419 = vadd.s32 %v416, %v414
        %v420 = vadd.s32 %v416, %v415
        %vm421 = vcmp.ge.s32.totalorder %v417, 0
        %vm422 = vcmp.ge.s32.totalorder %v418, 0
        %vm423 = vcmp.ge.s32.totalorder %v419, 0
        %vm424 = vcmp.ge.s32.totalorder %v420, 0
        %vm425 = vcmp.lt.s32.totalorder %v417, 16
        %vm426 = vcmp.lt.s32.totalorder %v418, 16
        %vm427 = vcmp.lt.s32.totalorder %v419, 16
        %vm428 = vcmp.lt.s32.totalorder %v420, 16
        %vm429 = vmand %vm421, %vm425
        %vm430 = vmand %vm422, %vm426
        %vm431 = vmand %vm423, %vm427
        %vm432 = vmand %vm424, %vm428
        %v433 = vsel %vm429, 1, 0
        %v434 = vsel %vm430, 1, 0
        %v435 = vsel %vm431, 1, 0
        %v436 = vsel %vm432, 1, 0
        %vm437 = vcmp.eq.s32.totalorder %v433, 1
        %vm438 = vcmp.eq.s32.totalorder %v434, 1
        %vm439 = vcmp.eq.s32.totalorder %v435, 1
        %vm440 = vcmp.eq.s32.totalorder %v436, 1
        %v441 = vsel %vm437, %v405, 0.0
        %v442 = vsel %vm438, %v406, 0.0
        %v443 = vsel %vm439, %v407, 0.0
        %v444 = vsel %vm440, %v408, 0.0
        %v445 = vld [vmem:[#allocation8] sm:$0xff]
        %v446 = vld [vmem:[#allocation8 + $0x8] sm:$0xff]
        %v447 = vld [vmem:[#allocation8 + $0x10] sm:$0xff]
        %v448 = vld [vmem:[#allocation8 + $0x18] sm:$0xff]
        %s449 = scalar_lea.vmem [#allocation8], 32
        %v450 = vld [vmem:[%s449] sm:$0xff]
        %v451 = vld [vmem:[%s449 + $0x8] sm:$0xff]
        %v452 = vld [vmem:[%s449 + $0x10] sm:$0xff]
        %v453 = vld [vmem:[%s449 + $0x18] sm:$0xff]
        %vm454 = vcmask 261120
        %v456 = vsel %vm454, %v442, 0
        %v459 = vsel %vm454, %v443, 0
        %461 = vmatprep.subr.mxu0 0.0
        %462 = vmatpush1.msra.mxu0 0.0
        %463 = vmatprep.subr.mxu0 0.0
        %464 = vmatpush1.msra.mxu0 0.0
        %465 = vmatprep.subr.mxu0 0.0
        %466 = vmatpush1.msra.mxu0 0.0
        %467 = vmatprep.subr.mxu0 0.0
        %468 = vmatpush1.msra.mxu0 0.0
        %469 = vmatprep.subr.mxu0 0.0
        %470 = vmatpush1.msra.mxu0 0.0
        %471 = vmatprep.subr.mxu0 0.0
        %472 = vmatpush1.msra.mxu0 0.0
        %473 = vmatprep.subr.mxu0 0.0
        %474 = vmatpush1.msra.mxu0 0.0
        %475 = vmatprep.subr.mxu0 0.0
        %476 = vmatpush1.msra.mxu0 0.0
        %477 = vmatprep.subr.mxu0 0.0
        %478 = vmatpush1.msra.mxu0 0.0
        %479 = vmatprep.subr.mxu0 0.0
        %480 = vmatpush1.msra.mxu0 0.0
        %481 = vmatprep.subr.mxu0 0.0
        %482 = vmatpush1.msra.mxu0 0.0
        %483 = vmatprep.subr.mxu0 0.0
        %484 = vmatpush1.msra.mxu0 0.0
        %485 = vmatprep.subr.mxu0 0.0
        %486 = vmatpush1.msra.mxu0 %v453
        %487 = vmatprep.subr.mxu0 0.0
        %488 = vmatpush1.msra.mxu0 %v452
        %489 = vmatprep.subr.mxu0 0.0
        %490 = vmatpush1.msra.mxu0 %v451
        %491 = vmatprep.subr.mxu0 0.0
        %492 = vmatpush1.msra.mxu0 %v450
        %493 = vmatprep.subr.mxu0 0.0
        %494 = vmatpush2.msra.mxu0 0.0
        %495 = vmatprep.subr.mxu0 0.0
        %496 = vmatpush2.msra.mxu0 0.0
        %497 = vmatprep.subr.mxu0 0.0
        %498 = vmatpush2.msra.mxu0 0.0
        %499 = vmatprep.subr.mxu0 0.0
        %500 = vmatpush2.msra.mxu0 0.0
        %501 = vmatprep.subr.mxu0 0.0
        %502 = vmatpush2.msra.mxu0 0.0
        %503 = vmatprep.subr.mxu0 0.0
        %504 = vmatpush2.msra.mxu0 0.0
        %505 = vmatprep.subr.mxu0 0.0
        %506 = vmatpush2.msra.mxu0 0.0
        %507 = vmatprep.subr.mxu0 0.0
        %508 = vmatpush2.msra.mxu0 0.0
        %509 = vmatprep.subr.mxu0 0.0
        %510 = vmatpush2.msra.mxu0 0.0
        %511 = vmatprep.subr.mxu0 0.0
        %512 = vmatpush2.msra.mxu0 0.0
        %513 = vmatprep.subr.mxu0 0.0
        %514 = vmatpush2.msra.mxu0 0.0
        %515 = vmatprep.subr.mxu0 0.0
        %516 = vmatpush2.msra.mxu0 0.0
        %517 = vmatprep.subr.mxu0 0.0
        %518 = vmatpush2.msra.mxu0 0.0
        %519 = vmatprep.subr.mxu0 0.0
        %520 = vmatpush2.msra.mxu0 0.0
        %521 = vmatprep.subr.mxu0 0.0
        %522 = vmatpush2.msra.mxu0 0.0
        %523 = vmatprep.subr.mxu0 0.0
        %524 = vmatpush2.msra.mxu0 0.0
        %525 = vmatprep.mubr.f32.mxu0 0.0
        %526 = vmatmul.mubr.f32.gmra.mxu0 %v456
        %v527 = vpop.f32.mrf.mxu0
        %v528 = vadd.f32 0.0, %v527
        %v529 = vpop.f32.mrf.mxu0
        %530 = vmatprep.mubr.f32.mxu0 0.0
        %531 = vmatmul.mubr.f32.gmra.mxu0 %v459
        %v532 = vpop.f32.mrf.mxu0
        %v533 = vadd.f32 0.0, %v532
        %v534 = vpop.f32.mrf.mxu0
        %535 = vdwg.mxu0
        %vm537 = vcmask 1040384
        %v538 = vrot.slane %v441, 7
        %v539 = vrot.slane %v442, 7
        %v540 = vsel %vm537, %v538, %v539
        %v541 = vrot.slane %v443, 7
        %v542 = vsel %vm537, %v539, %v541
        %v543 = vsel %vm454, %v540, 0
        %v545 = vsel %vm454, %v542, 0
        %547 = vmatprep.subr.mxu0 0.0
        %548 = vmatpush1.msra.mxu0 0.0
        %549 = vmatprep.subr.mxu0 0.0
        %550 = vmatpush1.msra.mxu0 0.0
        %551 = vmatprep.subr.mxu0 0.0
        %552 = vmatpush1.msra.mxu0 0.0
        %553 = vmatprep.subr.mxu0 0.0
        %554 = vmatpush1.msra.mxu0 0.0
        %555 = vmatprep.subr.mxu0 0.0
        %556 = vmatpush1.msra.mxu0 0.0
        %557 = vmatprep.subr.mxu0 0.0
        %558 = vmatpush1.msra.mxu0 0.0
        %559 = vmatprep.subr.mxu0 0.0
        %560 = vmatpush1.msra.mxu0 0.0
        %561 = vmatprep.subr.mxu0 0.0
        %562 = vmatpush1.msra.mxu0 0.0
        %563 = vmatprep.subr.mxu0 0.0
        %564 = vmatpush1.msra.mxu0 0.0
        %565 = vmatprep.subr.mxu0 0.0
        %566 = vmatpush1.msra.mxu0 0.0
        %567 = vmatprep.subr.mxu0 0.0
        %568 = vmatpush1.msra.mxu0 0.0
        %569 = vmatprep.subr.mxu0 0.0
        %570 = vmatpush1.msra.mxu0 0.0
        %571 = vmatprep.subr.mxu0 0.0
        %572 = vmatpush1.msra.mxu0 %v448
        %573 = vmatprep.subr.mxu0 0.0
        %574 = vmatpush1.msra.mxu0 %v447
        %575 = vmatprep.subr.mxu0 0.0
        %576 = vmatpush1.msra.mxu0 %v446
        %577 = vmatprep.subr.mxu0 0.0
        %578 = vmatpush1.msra.mxu0 %v445
        %579 = vmatprep.subr.mxu0 0.0
        %580 = vmatpush2.msra.mxu0 0.0
        %581 = vmatprep.subr.mxu0 0.0
        %582 = vmatpush2.msra.mxu0 0.0
        %583 = vmatprep.subr.mxu0 0.0
        %584 = vmatpush2.msra.mxu0 0.0
        %585 = vmatprep.subr.mxu0 0.0
        %586 = vmatpush2.msra.mxu0 0.0
        %587 = vmatprep.subr.mxu0 0.0
        %588 = vmatpush2.msra.mxu0 0.0
        %589 = vmatprep.subr.mxu0 0.0
        %590 = vmatpush2.msra.mxu0 0.0
        %591 = vmatprep.subr.mxu0 0.0
        %592 = vmatpush2.msra.mxu0 0.0
        %593 = vmatprep.subr.mxu0 0.0
        %594 = vmatpush2.msra.mxu0 0.0
        %595 = vmatprep.subr.mxu0 0.0
        %596 = vmatpush2.msra.mxu0 0.0
        %597 = vmatprep.subr.mxu0 0.0
        %598 = vmatpush2.msra.mxu0 0.0
        %599 = vmatprep.subr.mxu0 0.0
        %600 = vmatpush2.msra.mxu0 0.0
        %601 = vmatprep.subr.mxu0 0.0
        %602 = vmatpush2.msra.mxu0 0.0
        %603 = vmatprep.subr.mxu0 0.0
        %604 = vmatpush2.msra.mxu0 0.0
        %605 = vmatprep.subr.mxu0 0.0
        %606 = vmatpush2.msra.mxu0 0.0
        %607 = vmatprep.subr.mxu0 0.0
        %608 = vmatpush2.msra.mxu0 0.0
        %609 = vmatprep.subr.mxu0 0.0
        %610 = vmatpush2.msra.mxu0 0.0
        %611 = vmatprep.mubr.f32.mxu0 0.0
        %612 = vmatmul.mubr.f32.gmra.mxu0 %v543
        %v613 = vpop.f32.mrf.mxu0
        %v614 = vadd.f32 %v528, %v613
        %v615 = vpop.f32.mrf.mxu0
        %616 = vmatprep.mubr.f32.mxu0 0.0
        %617 = vmatmul.mubr.f32.gmra.mxu0 %v545
        %v618 = vpop.f32.mrf.mxu0
        %v619 = vadd.f32 %v533, %v618
        %v620 = vpop.f32.mrf.mxu0
        %621 = vdwg.mxu0
        %s622 = scalar_lea.vmem [#allocation8], 64
        %v623 = vld [vmem:[%s622] sm:$0xff]
        %v624 = vld [vmem:[%s622 + $0x8] sm:$0xff]
        %v625 = vld [vmem:[%s622 + $0x10] sm:$0xff]
        %v626 = vld [vmem:[%s622 + $0x18] sm:$0xff]
        %vm628 = vcmask 1046528
        %v629 = vrot.slane %v442, 1
        %v630 = vrot.slane %v443, 1
        %v631 = vsel %vm628, %v629, %v630
        %v632 = vrot.slane %v444, 1
        %v633 = vsel %vm628, %v630, %v632
        %v634 = vsel %vm454, %v631, 0
        %v636 = vsel %vm454, %v633, 0
        %638 = vmatprep.subr.mxu0 0.0
        %639 = vmatpush1.msra.mxu0 0.0
        %640 = vmatprep.subr.mxu0 0.0
        %641 = vmatpush1.msra.mxu0 0.0
        %642 = vmatprep.subr.mxu0 0.0
        %643 = vmatpush1.msra.mxu0 0.0
        %644 = vmatprep.subr.mxu0 0.0
        %645 = vmatpush1.msra.mxu0 0.0
        %646 = vmatprep.subr.mxu0 0.0
        %647 = vmatpush1.msra.mxu0 0.0
        %648 = vmatprep.subr.mxu0 0.0
        %649 = vmatpush1.msra.mxu0 0.0
        %650 = vmatprep.subr.mxu0 0.0
        %651 = vmatpush1.msra.mxu0 0.0
        %652 = vmatprep.subr.mxu0 0.0
        %653 = vmatpush1.msra.mxu0 0.0
        %654 = vmatprep.subr.mxu0 0.0
        %655 = vmatpush1.msra.mxu0 0.0
        %656 = vmatprep.subr.mxu0 0.0
        %657 = vmatpush1.msra.mxu0 0.0
        %658 = vmatprep.subr.mxu0 0.0
        %659 = vmatpush1.msra.mxu0 0.0
        %660 = vmatprep.subr.mxu0 0.0
        %661 = vmatpush1.msra.mxu0 0.0
        %662 = vmatprep.subr.mxu0 0.0
        %663 = vmatpush1.msra.mxu0 %v626
        %664 = vmatprep.subr.mxu0 0.0
        %665 = vmatpush1.msra.mxu0 %v625
        %666 = vmatprep.subr.mxu0 0.0
        %667 = vmatpush1.msra.mxu0 %v624
        %668 = vmatprep.subr.mxu0 0.0
        %669 = vmatpush1.msra.mxu0 %v623
        %670 = vmatprep.subr.mxu0 0.0
        %671 = vmatpush2.msra.mxu0 0.0
        %672 = vmatprep.subr.mxu0 0.0
        %673 = vmatpush2.msra.mxu0 0.0
        %674 = vmatprep.subr.mxu0 0.0
        %675 = vmatpush2.msra.mxu0 0.0
        %676 = vmatprep.subr.mxu0 0.0
        %677 = vmatpush2.msra.mxu0 0.0
        %678 = vmatprep.subr.mxu0 0.0
        %679 = vmatpush2.msra.mxu0 0.0
        %680 = vmatprep.subr.mxu0 0.0
        %681 = vmatpush2.msra.mxu0 0.0
        %682 = vmatprep.subr.mxu0 0.0
        %683 = vmatpush2.msra.mxu0 0.0
        %684 = vmatprep.subr.mxu0 0.0
        %685 = vmatpush2.msra.mxu0 0.0
        %686 = vmatprep.subr.mxu0 0.0
        %687 = vmatpush2.msra.mxu0 0.0
        %688 = vmatprep.subr.mxu0 0.0
        %689 = vmatpush2.msra.mxu0 0.0
        %690 = vmatprep.subr.mxu0 0.0
        %691 = vmatpush2.msra.mxu0 0.0
        %692 = vmatprep.subr.mxu0 0.0
        %693 = vmatpush2.msra.mxu0 0.0
        %694 = vmatprep.subr.mxu0 0.0
        %695 = vmatpush2.msra.mxu0 0.0
        %696 = vmatprep.subr.mxu0 0.0
        %697 = vmatpush2.msra.mxu0 0.0
        %698 = vmatprep.subr.mxu0 0.0
        %699 = vmatpush2.msra.mxu0 0.0
        %700 = vmatprep.subr.mxu0 0.0
        %701 = vmatpush2.msra.mxu0 0.0
        %702 = vmatprep.mubr.f32.mxu0 0.0
        %703 = vmatmul.mubr.f32.gmra.mxu0 %v634
        %v704 = vpop.f32.mrf.mxu0
        %v705 = vadd.f32 0.0, %v704
        %v706 = vpop.f32.mrf.mxu0
        %707 = vmatprep.mubr.f32.mxu0 0.0
        %708 = vmatmul.mubr.f32.gmra.mxu0 %v636
        %v709 = vpop.f32.mrf.mxu0
        %v710 = vadd.f32 0.0, %v709
        %v711 = vpop.f32.mrf.mxu0
        %712 = vdwg.mxu0
        %v713 = vadd.f32 %v614, %v705
        %v714 = vadd.f32 %v619, %v710
        %v715 = vld [vmem:[%s4] sm:$0x1]
        %v717 = vlaneseq
        %v718 = vshrl.u32 %v717, 7
        %v719 = vsub.s32 0, %v718
        %v720 = vrot.slane %v715, %v719
        %v722 = vadd.f32 %v713, %v720
        %v723 = vadd.f32 %v714, %v720
        %724 = vst.msk [vmem:[%s390] sm:$0xff] %vm454, %v722
        %725 = vst.msk [vmem:[%s390 + $0x8] sm:$0xff] %vm454, %v723
        %s726 = sand.u32 %s198, 1
        %s727 = scalar_lea.sflag [#allocation4], %s726
        %s728 = sand.u32 %s198, 1
        %s729 = smul.addr %s728, 16
        %s730 = scalar_lea.vmem [#allocation10], %s729
        // Predicated region
        $region57: #{tpu_custom_call.1} parent=39 // pred_check
          %p731 = pneg %p208
        $region58: #{tpu_custom_call.1} parent=39 // pred_check_branch
          %733 = sbr.rel (%p731) target = $region60
        $region59: #{tpu_custom_call.1} parent=39 // pred_region
          %s734 = smul.u32 2, %s31
          %s736 = ssub.s32 256, 256
          %737 = vsyncadd %s727, %s736
          %s738 = smul.addr %s30, 2
          %s739 = sadd.s32 %s734, %s738
          %s740 = smul.addr %s739, 128
          %s741 = scalar_lea.hbm %s5, %s740
          %s742 = sshll.u32 %s730, 4
          %s743 = int_to_ptr.vmem [resolvable:$true] %s742
          %748 = dma.vmem_to_hbm [thread:$0]  %s743, 256, %s741, %s727, 128, 128, 8
        $region60: #{tpu_custom_call.1} parent=39 // pred_fallthru
          _
      $region40: #{tpu_custom_call.1} parent=5 // pred_fallthru
        _
      %p749 = scmp.le.s32.totalorder 2, %s21
      // Predicated region
      $region61: #{tpu_custom_call.1} parent=5 // pred_check
        %p750 = pneg %p749
      $region62: #{tpu_custom_call.1} parent=5 // pred_check_branch
        %752 = sbr.rel (%p750) target = $region64
      $region63: #{tpu_custom_call.1} parent=5 // pred_region
        %s753 = ssub.s32 %s21, 2
        // Predicated region
        $region65: #{tpu_custom_call.1} parent=63 // pred_check
          %p754 = pneg %p214
        $region66: #{tpu_custom_call.1} parent=63 // pred_check_branch
          %756 = sbr.rel (%p754) target = $region68
        $region67: #{tpu_custom_call.1} parent=63 // pred_region
          %s757 = sand.u32 %s199, 1
          %s758 = scalar_lea.sflag [#allocation4], %s757
          %s759 = sand.u32 %s199, 1
          %s760 = smul.addr %s759, 16
          %s761 = scalar_lea.vmem [#allocation10], %s760
          %762 = dma.done %s758, 256
        $region68: #{tpu_custom_call.1} parent=63 // pred_fallthru
          _
      $region64: #{tpu_custom_call.1} parent=5 // pred_fallthru
        _
    $region6: #{tpu_custom_call.1} parent=1 // loop_footer
      %s25 = sadd.s32 1, %s21
    $region7: #{tpu_custom_call.1} parent=1 // loop_footer_branch
      %20 = sbr.rel target = $region3
    $region8: #{tpu_custom_call.1} parent=1 // loop_exit
      _
    %763 = vsyncpa [#allocation3], 1
    %s764 = scalar_lea.sflag [#allocation3], 1
    %765 = vsyncpa %s764, 1
    %766 = vsyncpa [#allocation6], 1
    %s767 = scalar_lea.sflag [#allocation6], 1
    %768 = vsyncpa %s767, 1
    %769 = vsyncpa [#allocation9], 1
    %770 = vsyncpa [#allocation4], 1
    %s771 = scalar_lea.sflag [#allocation4], 1
    %772 = vsyncpa %s771, 1

</llo_original>
